<compile_context>
chip_gen: v5e
topology: v5e:2x2
jax: 0.10.0
libtpu: 0.0.40
codegen_flags: <defaults>
</compile_context>

<pallas_src>
import math
import functools

import jax
import jax.numpy as jnp
from jax.experimental import pallas as pl
from jax.experimental.pallas import tpu as pltpu

_LANE = 128      # lane width (last dim of a vreg)
_SUBLANE = 8     # sublane width (second-to-last dim of a vreg)
_INV_SQRT2 = 1.0 / math.sqrt(2.0)


def _round_up(n, m):
    return ((n + m - 1) // m) * m


def _make_fused_mlp_kernel(n_hidden):
    """Fused MLP kernel.

    Ref layout: (x_ref, w_0, ss_0, ..., w_{n-1}, ss_{n-1}, wout_ref, o_ref)
      w_l      : (Din_pad, Dout_pad)  Linear weight, pre-transposed (y = x @ W)
      ss_l     : (8, Dout_pad)        row 0 = folded scale, row 1 = folded shift
      wout_ref : (8, Dh_pad)          row 0 = final Linear weight (row vector),
                                      element [1, 0] = final bias
    """
    def kernel(x_ref, *refs):
        o_ref = refs[-1]
        h = x_ref[...]                                   # (TM, D0_pad) f32
        for l in range(n_hidden):
            w_ref = refs[2 * l]
            ss_ref = refs[2 * l + 1]
            y = jnp.dot(h, w_ref[...], preferred_element_type=jnp.float32)
            # folded Linear-bias + BatchNorm1d(running stats) affine
            y = y * ss_ref[0:1, :] + ss_ref[1:2, :]
            # exact (erf) GELU — matches torch.nn.GELU() default numerics
            h = 0.5 * y * (1.0 + jax.lax.erf(y * _INV_SQRT2))
            # TODO(synk): Dropout is identity in eval mode; training-mode RNG
            # dropout (and BN batch-stat updates) are not reproduced.
        wout_ref = refs[2 * n_hidden]
        # final Linear(., 1): VPU lane reduction instead of a Dout=1 MXU matmul
        red = jnp.sum(h * wout_ref[0:1, :], axis=-1, keepdims=True)   # (TM, 1)
        red = red + wout_ref[1:2, 0:1]                                # + bias
        # lane-dense store: broadcast across the 128-wide padded output block
        o_ref[...] = jnp.broadcast_to(red, o_ref.shape).astype(o_ref.dtype)

    return kernel


@functools.partial(jax.jit, static_argnames=("eps", "block_rows"))
def mlp_regression_forward(x, hidden_params, out_params, eps=1e-5,
                           block_rows=256):
    """Eval-mode forward of MLPRegression as a single fused Pallas call."""
    B, Din = x.shape
    n_hidden = len(hidden_params)

    # feature dims, padded to lane width
    dims = [Din] + [int(p["w"].shape[1]) for p in hidden_params]
    dims_pad = [_round_up(d, _LANE) for d in dims]

    # batch tiling: rows multiple of 8, tile <= block_rows (VMEM-safe on v7x)
    b8 = _round_up(B, _SUBLANE)
    tm = min(b8, block_rows)
    B_pad = _round_up(b8, tm)

    x_pad = jnp.zeros((B_pad, dims_pad[0]), jnp.float32).at[:B, :Din].set(x)

    operands = [x_pad]
    in_specs = [pl.BlockSpec((tm, dims_pad[0]), lambda i: (i, 0))]

    for l, p in enumerate(hidden_params):
        din, dout = p["w"].shape
        din_p, dout_p = dims_pad[l], dims_pad[l + 1]
        w_pad = jnp.zeros((din_p, dout_p), jnp.float32).at[:din, :dout].set(p["w"])
        inv_std = 1.0 / jnp.sqrt(p["var"] + eps)
        scale = p["gamma"] * inv_std
        shift = (p["b"] - p["mean"]) * scale + p["beta"]
        ss = jnp.zeros((_SUBLANE, dout_p), jnp.float32)
        ss = ss.at[0, :dout].set(scale).at[1, :dout].set(shift)
        operands += [w_pad, ss]
        in_specs += [
            pl.BlockSpec((din_p, dout_p), lambda i: (0, 0)),
            pl.BlockSpec((_SUBLANE, dout_p), lambda i: (0, 0)),
        ]

    w_out, b_out = out_params
    dh, dh_p = int(w_out.shape[0]), dims_pad[-1]
    wout_pack = jnp.zeros((_SUBLANE, dh_p), jnp.float32)
    wout_pack = wout_pack.at[0, :dh].set(w_out[:, 0]).at[1, 0].set(b_out[0])
    operands += [wout_pack]
    in_specs += [pl.BlockSpec((_SUBLANE, dh_p), lambda i: (0, 0))]

    out_pad = pl.pallas_call(
        _make_fused_mlp_kernel(n_hidden),
        out_shape=jax.ShapeDtypeStruct((B_pad, _LANE), jnp.float32),
        grid=(B_pad // tm,),
        in_specs=in_specs,
        out_specs=pl.BlockSpec((tm, _LANE), lambda i: (i, 0)),
        compiler_params=pltpu.CompilerParams(
            dimension_semantics=("parallel",)),
    )(*operands)

    return out_pad[:B, :1]


def reference_forward(x, hidden_params, out_params, eps=1e-5):
    """Pure-JAX reference (eval-mode PyTorch semantics)."""
    h = x
    hp = jax.lax.Precision.HIGHEST
    for p in hidden_params:
        y = jnp.dot(h, p["w"], precision=hp) + p["b"]
        y = (y - p["mean"]) / jnp.sqrt(p["var"] + eps) * p["gamma"] + p["beta"]
        h = 0.5 * y * (1.0 + jax.lax.erf(y * _INV_SQRT2))
    w_out, b_out = out_params
    return jnp.dot(h, w_out, precision=hp) + b_out


def init_params(key, input_dim, hidden_dims):
    """Deterministic synthetic parameters mirroring the PyTorch module shapes."""
    params = []
    in_features = input_dim
    for hidden_dim in hidden_dims:
        key, kw, kb, kg, kbe, km, kv = jax.random.split(key, 7)
        bound = 1.0 / math.sqrt(in_features)
        w = jax.random.uniform(kw, (in_features, hidden_dim), jnp.float32,
                               -bound, bound)                       # Linear weight^T
        b = jax.random.uniform(kb, (hidden_dim,), jnp.float32, -bound, bound)
        gamma = 1.0 + 0.1 * jax.random.normal(kg, (hidden_dim,), jnp.float32)
        beta = 0.1 * jax.random.normal(kbe, (hidden_dim,), jnp.float32)
        running_mean = 0.1 * jax.random.normal(km, (hidden_dim,), jnp.float32)
        running_var = 1.0 + 0.1 * jax.random.uniform(kv, (hidden_dim,), jnp.float32)
        params.append(dict(w=w, b=b, gamma=gamma, beta=beta,
                           mean=running_mean, var=running_var))
        in_features = hidden_dim
    key, kw, kb = jax.random.split(key, 3)
    bound = 1.0 / math.sqrt(in_features)
    w_out = jax.random.uniform(kw, (in_features, 1), jnp.float32, -bound, bound)
    b_out = jax.random.uniform(kb, (1,), jnp.float32, -bound, bound)
    return params, (w_out, b_out)


if __name__ == "__main__":
    key = jax.random.PRNGKey(0)
    batch, input_dim = 8, 16
    hidden_dims = [32, 32]

    key, kx, kp = jax.random.split(key, 3)
    x = jax.random.normal(kx, (batch, input_dim), jnp.float32)
    hidden_params, out_params = init_params(kp, input_dim, hidden_dims)

    y = mlp_regression_forward(x, hidden_params, out_params)
    jax.block_until_ready(y)
    assert y.shape == (batch, 1) and y.dtype == jnp.float32

    y_ref = reference_forward(x, hidden_params, out_params)
    assert jnp.allclose(y, y_ref, atol=2e-3, rtol=2e-3), (
        f"max abs err {float(jnp.max(jnp.abs(y - y_ref)))}")

    print("KERNEL_OK")
</pallas_src>

<mosaic_0001>
module attributes {stable_mosaic.version = 11 : i64} {
  func.func @kernel(%arg0: i32, %arg1: memref<8x128xf32, #tpu.memory_space<vmem>>, %arg2: memref<128x128xf32, #tpu.memory_space<vmem>>, %arg3: memref<8x128xf32, #tpu.memory_space<vmem>>, %arg4: memref<128x128xf32, #tpu.memory_space<vmem>>, %arg5: memref<8x128xf32, #tpu.memory_space<vmem>>, %arg6: memref<8x128xf32, #tpu.memory_space<vmem>>, %arg7: memref<8x128xf32, #tpu.memory_space<vmem>>) attributes {dimension_semantics = [#tpu.dimension_semantics<parallel>], iteration_bounds = array<i64: 1>, scalar_prefetch = 0 : i64, scratch_operands = 0 : i64, tpu.core_type = #tpu.core_type<tc>, window_params = [{transform_indices = @transform_0, window_bounds = array<i64: 8, 128>}, {pipeline_mode = #tpu.pipeline_mode<synchronous>, transform_indices = @transform_1, window_bounds = array<i64: 128, 128>}, {pipeline_mode = #tpu.pipeline_mode<synchronous>, transform_indices = @transform_2, window_bounds = array<i64: 8, 128>}, {pipeline_mode = #tpu.pipeline_mode<synchronous>, transform_indices = @transform_3, window_bounds = array<i64: 128, 128>}, {pipeline_mode = #tpu.pipeline_mode<synchronous>, transform_indices = @transform_4, window_bounds = array<i64: 8, 128>}, {pipeline_mode = #tpu.pipeline_mode<synchronous>, transform_indices = @transform_5, window_bounds = array<i64: 8, 128>}, {transform_indices = @transform_6, window_bounds = array<i64: 8, 128>}]} {
    %c0 = arith.constant 0 : index
    %c0_0 = arith.constant 0 : index
    %0 = vector.load %arg1[%c0, %c0_0] : memref<8x128xf32, #tpu.memory_space<vmem>>, vector<8x128xf32>
    %c0_1 = arith.constant 0 : index
    %c0_2 = arith.constant 0 : index
    %1 = vector.load %arg2[%c0_1, %c0_2] : memref<128x128xf32, #tpu.memory_space<vmem>>, vector<128x128xf32>
    %cst = arith.constant dense<0.000000e+00> : vector<8x128xf32>
    %2 = tpu.matmul %0, %1, %cst {dimension_numbers = #tpu.dot_dimension_numbers<[1], [0], [0], [1], [0, 0, 1, 1], [], []>} : vector<8x128xf32>, vector<128x128xf32>, vector<8x128xf32> -> vector<8x128xf32>
    %c0_3 = arith.constant 0 : index
    %c0_4 = arith.constant 0 : index
    %3 = vector.load %arg3[%c0_3, %c0_4] : memref<8x128xf32, #tpu.memory_space<vmem>>, vector<1x128xf32>
    %4 = vector.broadcast %3 : vector<1x128xf32> to vector<8x128xf32>
    %5 = arith.mulf %2, %4 : vector<8x128xf32>
    %c1 = arith.constant 1 : index
    %c0_5 = arith.constant 0 : index
    %6 = vector.load %arg3[%c1, %c0_5] : memref<8x128xf32, #tpu.memory_space<vmem>>, vector<1x128xf32>
    %7 = vector.broadcast %6 : vector<1x128xf32> to vector<8x128xf32>
    %8 = arith.addf %5, %7 : vector<8x128xf32>
    %cst_6 = arith.constant 5.000000e-01 : f32
    %9 = vector.broadcast %cst_6 : f32 to vector<8x128xf32>
    %10 = arith.mulf %9, %8 : vector<8x128xf32>
    %cst_7 = arith.constant 0.707106769 : f32
    %11 = vector.broadcast %cst_7 : f32 to vector<8x128xf32>
    %12 = arith.mulf %8, %11 : vector<8x128xf32>
    %13 = math.erf %12 : vector<8x128xf32>
    %cst_8 = arith.constant 1.000000e+00 : f32
    %14 = vector.broadcast %cst_8 : f32 to vector<8x128xf32>
    %15 = arith.addf %14, %13 : vector<8x128xf32>
    %16 = arith.mulf %10, %15 : vector<8x128xf32>
    %c0_9 = arith.constant 0 : index
    %c0_10 = arith.constant 0 : index
    %17 = vector.load %arg4[%c0_9, %c0_10] : memref<128x128xf32, #tpu.memory_space<vmem>>, vector<128x128xf32>
    %cst_11 = arith.constant dense<0.000000e+00> : vector<8x128xf32>
    %18 = tpu.matmul %16, %17, %cst_11 {dimension_numbers = #tpu.dot_dimension_numbers<[1], [0], [0], [1], [0, 0, 1, 1], [], []>} : vector<8x128xf32>, vector<128x128xf32>, vector<8x128xf32> -> vector<8x128xf32>
    %c0_12 = arith.constant 0 : index
    %c0_13 = arith.constant 0 : index
    %19 = vector.load %arg5[%c0_12, %c0_13] : memref<8x128xf32, #tpu.memory_space<vmem>>, vector<1x128xf32>
    %20 = vector.broadcast %19 : vector<1x128xf32> to vector<8x128xf32>
    %21 = arith.mulf %18, %20 : vector<8x128xf32>
    %c1_14 = arith.constant 1 : index
    %c0_15 = arith.constant 0 : index
    %22 = vector.load %arg5[%c1_14, %c0_15] : memref<8x128xf32, #tpu.memory_space<vmem>>, vector<1x128xf32>
    %23 = vector.broadcast %22 : vector<1x128xf32> to vector<8x128xf32>
    %24 = arith.addf %21, %23 : vector<8x128xf32>
    %cst_16 = arith.constant 5.000000e-01 : f32
    %25 = vector.broadcast %cst_16 : f32 to vector<8x128xf32>
    %26 = arith.mulf %25, %24 : vector<8x128xf32>
    %cst_17 = arith.constant 0.707106769 : f32
    %27 = vector.broadcast %cst_17 : f32 to vector<8x128xf32>
    %28 = arith.mulf %24, %27 : vector<8x128xf32>
    %29 = math.erf %28 : vector<8x128xf32>
    %cst_18 = arith.constant 1.000000e+00 : f32
    %30 = vector.broadcast %cst_18 : f32 to vector<8x128xf32>
    %31 = arith.addf %30, %29 : vector<8x128xf32>
    %32 = arith.mulf %26, %31 : vector<8x128xf32>
    %c0_19 = arith.constant 0 : index
    %c0_20 = arith.constant 0 : index
    %33 = vector.load %arg6[%c0_19, %c0_20] : memref<8x128xf32, #tpu.memory_space<vmem>>, vector<1x128xf32>
    %34 = vector.broadcast %33 : vector<1x128xf32> to vector<8x128xf32>
    %35 = arith.mulf %32, %34 : vector<8x128xf32>
    %cst_21 = arith.constant dense<0.000000e+00> : vector<8xf32>
    %36 = vector.multi_reduction <add>, %35, %cst_21 [1] : vector<8x128xf32> to vector<8xf32>
    %37 = vector.shape_cast %36 : vector<8xf32> to vector<8x1xf32>
    %c1_22 = arith.constant 1 : index
    %c0_23 = arith.constant 0 : index
    %38 = vector.load %arg6[%c1_22, %c0_23] : memref<8x128xf32, #tpu.memory_space<vmem>>, vector<1x1xf32>
    %39 = vector.broadcast %38 : vector<1x1xf32> to vector<8x1xf32>
    %40 = arith.addf %37, %39 : vector<8x1xf32>
    %41 = vector.shape_cast %40 : vector<8x1xf32> to vector<8x1xf32>
    %42 = vector.broadcast %41 : vector<8x1xf32> to vector<8x128xf32>
    %c0_24 = arith.constant 0 : index
    %c0_25 = arith.constant 0 : index
    %43 = vector.load %arg7[%c0_24, %c0_25] : memref<8x128xf32, #tpu.memory_space<vmem>>, vector<8x128xf32>
    tpu.vector_store %arg7[%c0_24, %c0_25], %42 {strides = array<i32>} : memref<8x128xf32, #tpu.memory_space<vmem>>, vector<8x128xf32>,
    return
  }
  func.func @transform_0(%arg0: i32) -> (i32, i32) {
    %c0_i32 = arith.constant 0 : i32
    %c0_i32_0 = arith.constant 0 : i32
    return %arg0, %c0_i32 : i32, i32
  }
  func.func @transform_1(%arg0: i32) -> (i32, i32) {
    %c0_i32 = arith.constant 0 : i32
    %c0_i32_0 = arith.constant 0 : i32
    %c0_i32_1 = arith.constant 0 : i32
    return %c0_i32, %c0_i32_0 : i32, i32
  }
  func.func @transform_2(%arg0: i32) -> (i32, i32) {
    %c0_i32 = arith.constant 0 : i32
    %c0_i32_0 = arith.constant 0 : i32
    %c0_i32_1 = arith.constant 0 : i32
    return %c0_i32, %c0_i32_0 : i32, i32
  }
  func.func @transform_3(%arg0: i32) -> (i32, i32) {
    %c0_i32 = arith.constant 0 : i32
    %c0_i32_0 = arith.constant 0 : i32
    %c0_i32_1 = arith.constant 0 : i32
    return %c0_i32, %c0_i32_0 : i32, i32
  }
  func.func @transform_4(%arg0: i32) -> (i32, i32) {
    %c0_i32 = arith.constant 0 : i32
    %c0_i32_0 = arith.constant 0 : i32
    %c0_i32_1 = arith.constant 0 : i32
    return %c0_i32, %c0_i32_0 : i32, i32
  }
  func.func @transform_5(%arg0: i32) -> (i32, i32) {
    %c0_i32 = arith.constant 0 : i32
    %c0_i32_0 = arith.constant 0 : i32
    %c0_i32_1 = arith.constant 0 : i32
    return %c0_i32, %c0_i32_0 : i32, i32
  }
  func.func @transform_6(%arg0: i32) -> (i32, i32) {
    %c0_i32 = arith.constant 0 : i32
    %c0_i32_0 = arith.constant 0 : i32
    return %arg0, %c0_i32 : i32, i32
  }
}

</mosaic_0001>

<llo_original>
// kernel: mlp_regression_forward.1
$region0: #{mlp_regression_forward.1}
  #allocation0 [shape = 'u32[]', space=smem, size = 0x4, offset = 0x4, fixed_abs, tag = 'smem constant byte address 0x4 - core index']
  #allocation1 [shape = 'u32[72,128]{1,0:T(1,128)}', space=vmem, size = 0x9000, scoped, tag = 'internal scratch']
  %s0 = inlined_call_operand.vmem [shape: f32[8,128], index: 0, kind: input, shape index: {}]
  %s1 = inlined_call_operand.vmem [shape: f32[128,128], index: 1, kind: input, shape index: {}]
  %s2 = inlined_call_operand.vmem [shape: f32[8,128], index: 2, kind: input, shape index: {}]
  %s3 = inlined_call_operand.vmem [shape: f32[128,128], index: 3, kind: input, shape index: {}]
  %s4 = inlined_call_operand.vmem [shape: f32[8,128], index: 4, kind: input, shape index: {}]
  %s5 = inlined_call_operand.vmem [shape: f32[8,128], index: 5, kind: input, shape index: {}]
  %s6 = inlined_call_operand.vmem [shape: f32[8,128], index: 6, kind: output, shape index: {}]
  %s7 = sld [smem:[#allocation0]]
  $region34: #{mlp_regression_forward.1} parent=0
    _
  %s9 = ssub.s32 1, %s7
  %s10 = scalar_select 0, %s9, %s7
  // Predicated region
  $region2: #{mlp_regression_forward.1} parent=0 // pred_check
    _
  $region3: #{mlp_regression_forward.1} parent=0 // pred_check_branch
    %12 = sbr.rel (0) target = $region5
  $region4: #{mlp_regression_forward.1} parent=0 // pred_region
    _
  $region5: #{mlp_regression_forward.1} parent=0 // pred_fallthru
    _
  // Predicated region
  $region6: #{mlp_regression_forward.1} parent=0 // pred_check
    _
  $region7: #{mlp_regression_forward.1} parent=0 // pred_check_branch
    %14 = sbr.rel (0) target = $region9
  $region8: #{mlp_regression_forward.1} parent=0 // pred_region
    _
  $region9: #{mlp_regression_forward.1} parent=0 // pred_fallthru
    _
  // Predicated region
  $region10: #{mlp_regression_forward.1} parent=0 // pred_check
    _
  $region11: #{mlp_regression_forward.1} parent=0 // pred_check_branch
    %16 = sbr.rel (0) target = $region13
  $region12: #{mlp_regression_forward.1} parent=0 // pred_region
    _
  $region13: #{mlp_regression_forward.1} parent=0 // pred_fallthru
    _
  // Predicated region
  $region14: #{mlp_regression_forward.1} parent=0 // pred_check
    _
  $region15: #{mlp_regression_forward.1} parent=0 // pred_check_branch
    %18 = sbr.rel (0) target = $region17
  $region16: #{mlp_regression_forward.1} parent=0 // pred_region
    _
  $region17: #{mlp_regression_forward.1} parent=0 // pred_fallthru
    _
  // Predicated region
  $region18: #{mlp_regression_forward.1} parent=0 // pred_check
    _
  $region19: #{mlp_regression_forward.1} parent=0 // pred_check_branch
    %20 = sbr.rel (0) target = $region21
  $region20: #{mlp_regression_forward.1} parent=0 // pred_region
    _
  $region21: #{mlp_regression_forward.1} parent=0 // pred_fallthru
    _
  // Predicated region
  $region22: #{mlp_regression_forward.1} parent=0 // pred_check
    _
  $region23: #{mlp_regression_forward.1} parent=0 // pred_check_branch
    %22 = sbr.rel (0) target = $region25
  $region24: #{mlp_regression_forward.1} parent=0 // pred_region
    _
  $region25: #{mlp_regression_forward.1} parent=0 // pred_fallthru
    _
  %v23 = vld [vmem:[%s0] sm:$0xff]
  %v24 = vld [vmem:[%s1] sm:$0xff]
  %v25 = vld [vmem:[%s1 + $0x8] sm:$0xff]
  %v26 = vld [vmem:[%s1 + $0x10] sm:$0xff]
  %v27 = vld [vmem:[%s1 + $0x18] sm:$0xff]
  %v28 = vld [vmem:[%s1 + $0x20] sm:$0xff]
  %v29 = vld [vmem:[%s1 + $0x28] sm:$0xff]
  %v30 = vld [vmem:[%s1 + $0x30] sm:$0xff]
  %v31 = vld [vmem:[%s1 + $0x38] sm:$0xff]
  %v32 = vld [vmem:[%s1 + $0x40] sm:$0xff]
  %v33 = vld [vmem:[%s1 + $0x48] sm:$0xff]
  %v34 = vld [vmem:[%s1 + $0x50] sm:$0xff]
  %v35 = vld [vmem:[%s1 + $0x58] sm:$0xff]
  %v36 = vld [vmem:[%s1 + $0x60] sm:$0xff]
  %v37 = vld [vmem:[%s1 + $0x68] sm:$0xff]
  %v38 = vld [vmem:[%s1 + $0x70] sm:$0xff]
  %v39 = vld [vmem:[%s1 + $0x78] sm:$0xff]
  %40 = vmatpush.msra.mxu0 %v39
  %41 = vmatpush.msra.mxu0 %v38
  %42 = vmatpush.msra.mxu0 %v37
  %43 = vmatpush.msra.mxu0 %v36
  %44 = vmatpush.msra.mxu0 %v35
  %45 = vmatpush.msra.mxu0 %v34
  %46 = vmatpush.msra.mxu0 %v33
  %47 = vmatpush.msra.mxu0 %v32
  %48 = vmatpush.msra.mxu0 %v31
  %49 = vmatpush.msra.mxu0 %v30
  %50 = vmatpush.msra.mxu0 %v29
  %51 = vmatpush.msra.mxu0 %v28
  %52 = vmatpush.msra.mxu0 %v27
  %53 = vmatpush.msra.mxu0 %v26
  %54 = vmatpush.msra.mxu0 %v25
  %55 = vmatpush.msra.mxu0 %v24
  %56 = vmatmul.f32.gmra.mxu0 %v23
  %v57 = vpop.f32.mrf.mxu0
  %v58 = vadd.f32 0.0, %v57
  %59 = vdwg.mxu0
  %v60 = vld [vmem:[%s2] sm:$0x1]
  %v61 = vperm.slane %v60, 0
  %v62 = vmul.f32 %v58, %v61
  %v63 = vld [vmem:[%s2 + $0x1] sm:$0x1]
  %v64 = vperm.slane %v63, 0
  %v65 = vadd.f32 %v62, %v64
  %v66 = vmul.f32 %v65, 0.5
  %v67 = vmul.f32 %v65, 0.70710677
  %v68 = vmul.f32 %v67, %v67
  %v69 = vmin.f32 16.0, %v68
  %v70 = vmul.f32 %v69, 2.1237322e-06
  %v71 = vadd.f32 %v70, 0.00028619796
  %v72 = vmul.f32 %v69, %v71
  %v73 = vadd.f32 %v72, 0.0036580483
  %v74 = vmul.f32 %v69, %v73
  %v75 = vadd.f32 %v74, 0.05243302
  %v76 = vmul.f32 %v69, %v75
  %v77 = vadd.f32 %v76, 0.18741608
  %v78 = vmul.f32 %v69, %v77
  %v79 = vadd.f32 %v78, 1.1283791
  %v80 = vmul.f32 %v67, %v79
  %v81 = vmul.f32 %v69, 3.8918573e-05
  %v82 = vadd.f32 %v81, 0.001143296
  %v83 = vmul.f32 %v69, %v82
  %v84 = vadd.f32 %v83, 0.014752088
  %v85 = vmul.f32 %v69, %v84
  %v86 = vadd.f32 %v85, 0.112945676
  %v87 = vmul.f32 %v69, %v86
  %v88 = vadd.f32 %v87, 0.4994258
  %v89 = vmul.f32 %v69, %v88
  %v90 = vadd.f32 %v89, 1.0
  %v91 = vrcp.pop %v90
  %v92 = vmul.f32 %v90, %v91
  %v93 = vsub.f32 1.0, %v92
  %v94 = vmul.f32 %v91, %v93
  %v95 = vadd.f32 %v91, %v94
  %vm96 = vweird.f32 %v90
  %vm97 = vweird.f32 %v91
  %vm98 = vmor %vm96, %vm97
  %v99 = vsel %vm98, %v91, %v95
  %v100 = vand.u32 2147483647, %v90
  %vm101 = vcmp.eq.f32.partialorder %v100, 8.507059e+37
  %v102 = vand.u32 %v90, 2147483648
  %v103 = vor.u32 1.1754944e-38, %v102
  %v104 = vsel %vm101, %v103, %v99
  %v105 = vmul.f32 %v80, %v104
  %v106 = vmin.f32 %v105, 1.0
  %v107 = vmax.f32 %v106, -1.0
  %v108 = vadd.f32 %v107, 1.0
  %v109 = vmul.f32 %v66, %v108
  %v110 = vld [vmem:[%s3] sm:$0xff]
  %v111 = vld [vmem:[%s3 + $0x8] sm:$0xff]
  %v112 = vld [vmem:[%s3 + $0x10] sm:$0xff]
  %v113 = vld [vmem:[%s3 + $0x18] sm:$0xff]
  %v114 = vld [vmem:[%s3 + $0x20] sm:$0xff]
  %v115 = vld [vmem:[%s3 + $0x28] sm:$0xff]
  %v116 = vld [vmem:[%s3 + $0x30] sm:$0xff]
  %v117 = vld [vmem:[%s3 + $0x38] sm:$0xff]
  %v118 = vld [vmem:[%s3 + $0x40] sm:$0xff]
  %v119 = vld [vmem:[%s3 + $0x48] sm:$0xff]
  %v120 = vld [vmem:[%s3 + $0x50] sm:$0xff]
  %v121 = vld [vmem:[%s3 + $0x58] sm:$0xff]
  %v122 = vld [vmem:[%s3 + $0x60] sm:$0xff]
  %v123 = vld [vmem:[%s3 + $0x68] sm:$0xff]
  %v124 = vld [vmem:[%s3 + $0x70] sm:$0xff]
  %v125 = vld [vmem:[%s3 + $0x78] sm:$0xff]
  %126 = vmatpush.msra.mxu0 %v125
  %127 = vmatpush.msra.mxu0 %v124
  %128 = vmatpush.msra.mxu0 %v123
  %129 = vmatpush.msra.mxu0 %v122
  %130 = vmatpush.msra.mxu0 %v121
  %131 = vmatpush.msra.mxu0 %v120
  %132 = vmatpush.msra.mxu0 %v119
  %133 = vmatpush.msra.mxu0 %v118
  %134 = vmatpush.msra.mxu0 %v117
  %135 = vmatpush.msra.mxu0 %v116
  %136 = vmatpush.msra.mxu0 %v115
  %137 = vmatpush.msra.mxu0 %v114
  %138 = vmatpush.msra.mxu0 %v113
  %139 = vmatpush.msra.mxu0 %v112
  %140 = vmatpush.msra.mxu0 %v111
  %141 = vmatpush.msra.mxu0 %v110
  %142 = vmatmul.f32.gmra.mxu0 %v109
  %v143 = vpop.f32.mrf.mxu0
  %v144 = vadd.f32 0.0, %v143
  %145 = vdwg.mxu0
  %v146 = vld [vmem:[%s4] sm:$0x1]
  %v147 = vperm.slane %v146, 0
  %v148 = vmul.f32 %v144, %v147
  %v149 = vld [vmem:[%s4 + $0x1] sm:$0x1]
  %v150 = vperm.slane %v149, 0
  %v151 = vadd.f32 %v148, %v150
  %v152 = vmul.f32 %v151, 0.5
  %v153 = vmul.f32 %v151, 0.70710677
  %v154 = vmul.f32 %v153, %v153
  %v155 = vmin.f32 16.0, %v154
  %v156 = vmul.f32 %v155, 2.1237322e-06
  %v157 = vadd.f32 %v156, 0.00028619796
  %v158 = vmul.f32 %v155, %v157
  %v159 = vadd.f32 %v158, 0.0036580483
  %v160 = vmul.f32 %v155, %v159
  %v161 = vadd.f32 %v160, 0.05243302
  %v162 = vmul.f32 %v155, %v161
  %v163 = vadd.f32 %v162, 0.18741608
  %v164 = vmul.f32 %v155, %v163
  %v165 = vadd.f32 %v164, 1.1283791
  %v166 = vmul.f32 %v153, %v165
  %v167 = vmul.f32 %v155, 3.8918573e-05
  %v168 = vadd.f32 %v167, 0.001143296
  %v169 = vmul.f32 %v155, %v168
  %v170 = vadd.f32 %v169, 0.014752088
  %v171 = vmul.f32 %v155, %v170
  %v172 = vadd.f32 %v171, 0.112945676
  %v173 = vmul.f32 %v155, %v172
  %v174 = vadd.f32 %v173, 0.4994258
  %v175 = vmul.f32 %v155, %v174
  %v176 = vadd.f32 %v175, 1.0
  %v177 = vrcp.pop %v176
  %v178 = vmul.f32 %v176, %v177
  %v179 = vsub.f32 1.0, %v178
  %v180 = vmul.f32 %v177, %v179
  %v181 = vadd.f32 %v177, %v180
  %vm182 = vweird.f32 %v176
  %vm183 = vweird.f32 %v177
  %vm184 = vmor %vm182, %vm183
  %v185 = vsel %vm184, %v177, %v181
  %v186 = vand.u32 2147483647, %v176
  %vm187 = vcmp.eq.f32.partialorder %v186, 8.507059e+37
  %v188 = vand.u32 %v176, 2147483648
  %v189 = vor.u32 1.1754944e-38, %v188
  %v190 = vsel %vm187, %v189, %v185
  %v191 = vmul.f32 %v166, %v190
  %v192 = vmin.f32 %v191, 1.0
  %v193 = vmax.f32 %v192, -1.0
  %v194 = vadd.f32 %v193, 1.0
  %v195 = vmul.f32 %v152, %v194
  %v196 = vld [vmem:[%s5] sm:$0x1]
  %v197 = vperm.slane %v196, 0
  %v198 = vmul.f32 %v195, %v197
  %199 = vadd.xlane.f32.xlu0 %v198
  %v200 = vpop.xlane.xlu0 %199
  %v201 = vld [vmem:[%s5 + $0x1] sm:$0x1]
  %v202 = vperm.slane %v201, 0
  %v203 = vadd.f32 %v200, %v202
  %205 = vset.pattern.permute.xlu0 0
  %206 = vperm.xlu0 %205, %v203
  %v207 = vpop.permute.xlu0 %206
  %209 = vst [vmem:[%s6] sm:$0xff] %v207
  // Predicated region
  $region26: #{mlp_regression_forward.1} parent=0 // pred_check
    _
  $region27: #{mlp_regression_forward.1} parent=0 // pred_check_branch
    %211 = sbr.rel (0) target = $region29
  $region28: #{mlp_regression_forward.1} parent=0 // pred_region
    _
  $region29: #{mlp_regression_forward.1} parent=0 // pred_fallthru
    _
  // Predicated region
  $region30: #{mlp_regression_forward.1} parent=0 // pred_check
    _
  $region31: #{mlp_regression_forward.1} parent=0 // pred_check_branch
    %213 = sbr.rel (0) target = $region33
  $region32: #{mlp_regression_forward.1} parent=0 // pred_region
    _
  $region33: #{mlp_regression_forward.1} parent=0 // pred_fallthru
    _

</llo_original>
